<compile_context>
chip_gen: v6e
topology: v6e:2x2x1
jax: 0.10.0
libtpu: 0.0.40
codegen_flags: <defaults>
</compile_context>

<pallas_src>
import functools
import math

import jax
import jax.numpy as jnp
from jax import lax
from jax.experimental import pallas as pl
from jax.experimental.pallas import tpu as pltpu


def dualpn_endecoder_kernel(
    image_ref,    # (B, Dimg)           image features
    clsin_ref,    # (C, Datt+Dimg)      [attributes | img_proto] (wrapper concat)
    wfused_ref,   # (Datt+Dimg, Ha+H)   folded (slim->enc)->[att_g | dec->proto_w]
    imgw_ref,     # (Dimg, H)           img_w
    fcw_ref,      # (H, 1)              fc weight, pre-transposed in wrapper
    bias_ref,     # (2, Ha+H)           row0: fused pre-attn bias, row1[:H]: post-attn bias
    fcb_ref,      # (1, 1) in SMEM      fc bias scalar
    out_ref,      # (B*C, 1)
    *,
    thresh: float,
    temperature: float,
):
    f32 = jnp.float32
    B = image_ref.shape[0]
    C = clsin_ref.shape[0]
    H = imgw_ref.shape[1]
    Ha = wfused_ref.shape[1] - H

    x = image_ref[...].astype(f32)            # (B, Dimg)
    cls_in = clsin_ref[...].astype(f32)       # (C, Datt+Dimg)

    # ---- fused proto_slim -> encoder -> {att_g | decoder->proto_w}: one dot --
    tmp = (
        jnp.dot(cls_in, wfused_ref[...], preferred_element_type=f32)
        + bias_ref[0:1, :]
    )                                          # (C, Ha+H)
    g = tmp[:, :Ha]                            # (C, Ha)  == enc_proto @ att_g
    encw = tmp[:, Ha:]                         # (C, H)   == enc_proto @ (dec_w.T @ proto_w)

    # ---- cosine-similarity graph attention over classes ---------------------
    inv_norm = lax.rsqrt(jnp.sum(g * g, axis=-1, keepdims=True) + 1e-12)
    gn = g * inv_norm
    # contract last dims of both operands -> no explicit transpose in-kernel
    sim = lax.dot_general(
        gn, gn, dimension_numbers=(((1,), (1,)), ((), ())),
        preferred_element_type=f32,
    )                                          # (C, C)
    raw = jnp.where(sim > thresh, sim, jnp.full_like(sim, -9e15))
    z = raw * temperature                      # T > 0 (matches module semantics)
    z = z - jnp.max(z, axis=1, keepdims=True)
    e = jnp.exp(z)
    attn = e * pl.reciprocal(jnp.sum(e, axis=1, keepdims=True), approx=True)

    # ---- attention propagation fused with decoder + proto_w head ------------
    # attn @ (enc @ Wdp)  ==  ((attn @ enc) @ dec_w.T + dec_b) @ proto_w + proto_b
    cls_h = (
        jnp.dot(attn, encw, preferred_element_type=f32) + bias_ref[1:2, :H]
    )                                          # (C, H)
    vis_h = jnp.dot(x, imgw_ref[...], preferred_element_type=f32)   # (B, H)

    # ---- broadcasted hidden layer + ReLU + fc head (on the MXU) --------------
    hidden = jnp.maximum(vis_h[:, None, :] + cls_h[None, :, :], 0.0)  # (B, C, H)
    hidden2d = jnp.reshape(hidden, (B * C, H))                        # leading-dim merge
    out = (
        jnp.dot(hidden2d, fcw_ref[...], preferred_element_type=f32)
        + fcb_ref[0, 0]
    )                                          # (B*C, 1)
    out_ref[...] = out.astype(out_ref.dtype)


def dualpn_endecoder_forward(
    image_feats, img_proto, attributes, params, *, thresh, temperature
):
    f32 = jnp.float32
    B, Dimg = image_feats.shape
    C, Datt = attributes.shape
    Ha = params["att_g"].shape[1]
    H = params["img_w"].shape[1]

    enc_wT = params["enc_w"].T.astype(f32)          # (Datt+Dimg, Datt)
    A = enc_wT[:Datt, :]                            # attributes block
    Bm = enc_wT[Datt:, :]                           # slimmed-proto block (Datt, Datt)

    # Fold proto_slim into the encoder's proto half (parameters only, exact).
    W_enc = jnp.concatenate([A, params["slim_w"].T.astype(f32) @ Bm], axis=0)   # (Datt+Dimg, Datt)
    b_enc = params["enc_b"][None, :].astype(f32) + params["slim_b"][None, :].astype(f32) @ Bm

    # Fold decoder into proto_w (parameters only, exact).
    Wdp = params["dec_w"].T.astype(f32) @ params["proto_w"].astype(f32)          # (Datt, H)
    bdp = params["dec_b"][None, :].astype(f32) @ params["proto_w"].astype(f32) \
        + params["proto_b"].astype(f32)                                           # (1, H)

    # Pack the two same-LHS projections of enc_proto, then fold the encoder in.
    W_gd = jnp.concatenate([params["att_g"].astype(f32), Wdp], axis=1)            # (Datt, Ha+H)
    W_fused = W_enc @ W_gd                                                         # (Datt+Dimg, Ha+H)
    b_fused = b_enc @ W_gd                                                         # (1, Ha+H)

    bias_pack = jnp.zeros((2, Ha + H), f32)
    bias_pack = bias_pack.at[0, :].set(b_fused[0])
    bias_pack = bias_pack.at[1, :H].set(bdp[0])

    cls_in = jnp.concatenate(
        [attributes.astype(f32), img_proto.astype(f32)], axis=-1
    )                                                                              # (C, Datt+Dimg)
    fcw_col = params["fc_w"].T.astype(f32)                                         # (H, 1)
    fcb = jnp.reshape(params["fc_b"], (1, 1)).astype(f32)                          # SMEM scalar

    kernel = functools.partial(
        dualpn_endecoder_kernel, thresh=float(thresh), temperature=float(temperature)
    )
    vmem = pl.BlockSpec(memory_space=pltpu.MemorySpace.VMEM)
    smem = pl.BlockSpec(memory_space=pltpu.MemorySpace.SMEM)

    out_flat = pl.pallas_call(
        kernel,
        out_shape=jax.ShapeDtypeStruct((B * C, 1), f32),
        in_specs=[vmem, vmem, vmem, vmem, vmem, vmem, smem],
        out_specs=vmem,
    )(
        image_feats.astype(f32), cls_in, W_fused, params["img_w"].astype(f32),
        fcw_col, bias_pack, fcb,
    )
    return out_flat.reshape(B, C)


def dualpn_endecoder_reference(
    image_feats, img_proto, attributes, params, *, thresh, temperature
):
    """Pure-JAX reference, mirrors the PyTorch forward op-for-op (un-fused)."""
    slim = img_proto @ params["slim_w"].T + params["slim_b"]
    comb = jnp.concatenate([attributes, slim], axis=-1)
    enc = comb @ params["enc_w"].T + params["enc_b"]
    g = enc @ params["att_g"]
    gn = g / jnp.sqrt(jnp.sum(g * g, axis=-1, keepdims=True) + 1e-12)
    sim = gn @ gn.T
    raw = jnp.where(sim > thresh, sim, jnp.full_like(sim, -9e15))
    attn = jax.nn.softmax(raw * temperature, axis=1)
    prop = attn @ enc
    outs = prop @ params["dec_w"].T + params["dec_b"]
    hidden = jax.nn.relu(
        (image_feats @ params["img_w"])[:, None, :]
        + (outs @ params["proto_w"] + params["proto_b"])[None, :, :]
    )
    return jnp.einsum("bch,h->bc", hidden, params["fc_w"][0]) + params["fc_b"][0]


def init_params(key, att_dim, image_dim, att_hC, hidden_C):
    """Deterministic synthetic init with torch-layout shapes."""
    ks = jax.random.split(key, 12)
    comb = att_dim + image_dim

    def kaiming_uniform(k, shape, fan_in):
        bound = math.sqrt(6.0 / ((1.0 + 5.0) * fan_in))   # a = sqrt(5)
        return jax.random.uniform(k, shape, jnp.float32, -bound, bound)

    def uniform(k, shape, bound):
        return jax.random.uniform(k, shape, jnp.float32, -bound, bound)

    return {
        "enc_w": kaiming_uniform(ks[0], (att_dim, comb), comb),
        "enc_b": uniform(ks[1], (att_dim,), 1.0 / math.sqrt(comb)),
        "att_g": kaiming_uniform(ks[2], (att_dim, att_hC), att_dim),
        "slim_w": kaiming_uniform(ks[3], (att_dim, image_dim), image_dim),
        "slim_b": uniform(ks[4], (att_dim,), 1.0 / math.sqrt(image_dim)),
        "dec_w": kaiming_uniform(ks[5], (comb, att_dim), att_dim),
        "dec_b": uniform(ks[6], (comb,), 1.0 / math.sqrt(att_dim)),
        "img_w": kaiming_uniform(ks[7], (image_dim, hidden_C), image_dim),
        "proto_w": kaiming_uniform(ks[8], (comb, hidden_C), comb),
        "proto_b": uniform(ks[9], (1, hidden_C), 1.0 / math.sqrt(image_dim)),
        "fc_w": kaiming_uniform(ks[10], (1, hidden_C), hidden_C),
        "fc_b": uniform(ks[11], (1,), 1.0 / math.sqrt(hidden_C)),
    }


if __name__ == "__main__":
    # The torch module requires image_dim == att_dim for its own shapes to be
    # consistent (proto_w expects att_dim + proto_red_dim == att_dim + image_dim).
    batch, cls_num = 8, 16
    att_dim = image_dim = 32
    att_hC, hidden_C = 16, 32
    T = 5.0
    degree = 60
    thresh = math.cos(math.pi * degree / 180.0)
    assert image_dim == att_dim

    key = jax.random.PRNGKey(0)
    k_p, k_x, k_pr, k_at = jax.random.split(key, 4)

    params = init_params(k_p, att_dim, image_dim, att_hC, hidden_C)
    image_feats = jax.random.normal(k_x, (batch, image_dim), jnp.float32)
    img_proto = jax.random.normal(k_pr, (cls_num, image_dim), jnp.float32)
    attributes = jax.random.normal(k_at, (cls_num, att_dim), jnp.float32)

    out = dualpn_endecoder_forward(
        image_feats, img_proto, attributes, params, thresh=thresh, temperature=T
    )
    out = jax.block_until_ready(out)

    ref = dualpn_endecoder_reference(
        image_feats, img_proto, attributes, params, thresh=thresh, temperature=T
    )
    assert out.shape == (batch, cls_num), out.shape
    # Tolerance accommodates the approximate EUP reciprocal in the softmax and
    # the exact-in-math parameter folding (FP reassociation only).
    err = float(jnp.max(jnp.abs(out - ref)))
    assert jnp.allclose(out, ref, rtol=2e-3, atol=2e-3), f"mismatch vs reference: {err}"

    print("KERNEL_OK")
</pallas_src>

<mosaic_0001>
module attributes {stable_mosaic.version = 11 : i64} {
  func.func @dualpn_endecoder_kernel(%arg0: memref<8x32xf32, #tpu.memory_space<vmem>>, %arg1: memref<16x64xf32, #tpu.memory_space<vmem>>, %arg2: memref<64x48xf32, #tpu.memory_space<vmem>>, %arg3: memref<32x32xf32, #tpu.memory_space<vmem>>, %arg4: memref<32x1xf32, #tpu.memory_space<vmem>>, %arg5: memref<2x48xf32, #tpu.memory_space<vmem>>, %arg6: memref<1x1xf32, #tpu.memory_space<smem>>, %arg7: memref<128x1xf32, #tpu.memory_space<vmem>>) attributes {dimension_semantics = [], scalar_prefetch = 0 : i64, scratch_operands = 0 : i64, tpu.core_type = #tpu.core_type<tc>} {
    %c0 = arith.constant 0 : index
    %c0_0 = arith.constant 0 : index
    %0 = vector.load %arg0[%c0, %c0_0] : memref<8x32xf32, #tpu.memory_space<vmem>>, vector<8x32xf32>
    %c0_1 = arith.constant 0 : index
    %c0_2 = arith.constant 0 : index
    %1 = vector.load %arg1[%c0_1, %c0_2] : memref<16x64xf32, #tpu.memory_space<vmem>>, vector<16x64xf32>
    %c0_3 = arith.constant 0 : index
    %c0_4 = arith.constant 0 : index
    %2 = vector.load %arg2[%c0_3, %c0_4] : memref<64x48xf32, #tpu.memory_space<vmem>>, vector<64x48xf32>
    %cst = arith.constant dense<0.000000e+00> : vector<16x48xf32>
    %3 = tpu.matmul %1, %2, %cst {dimension_numbers = #tpu.dot_dimension_numbers<[1], [0], [0], [1], [0, 0, 1, 1], [], []>} : vector<16x64xf32>, vector<64x48xf32>, vector<16x48xf32> -> vector<16x48xf32>
    %c0_5 = arith.constant 0 : index
    %c0_6 = arith.constant 0 : index
    %4 = vector.load %arg5[%c0_5, %c0_6] : memref<2x48xf32, #tpu.memory_space<vmem>>, vector<1x48xf32>
    %5 = vector.broadcast %4 : vector<1x48xf32> to vector<16x48xf32>
    %6 = arith.addf %3, %5 : vector<16x48xf32>
    %7 = vector.extract_strided_slice %6 {offsets = [0, 0], sizes = [16, 16], strides = [1, 1]} : vector<16x48xf32> to vector<16x16xf32>
    %8 = vector.extract_strided_slice %6 {offsets = [0, 16], sizes = [16, 32], strides = [1, 1]} : vector<16x48xf32> to vector<16x32xf32>
    %9 = arith.mulf %7, %7 : vector<16x16xf32>
    %cst_7 = arith.constant dense<0.000000e+00> : vector<16xf32>
    %10 = vector.multi_reduction <add>, %9, %cst_7 [1] : vector<16x16xf32> to vector<16xf32>
    %11 = vector.shape_cast %10 : vector<16xf32> to vector<16x1xf32>
    %cst_8 = arith.constant 9.99999996E-13 : f32
    %12 = vector.broadcast %cst_8 : f32 to vector<16x1xf32>
    %13 = arith.addf %11, %12 : vector<16x1xf32>
    %14 = math.rsqrt %13 : vector<16x1xf32>
    %15 = vector.broadcast %14 : vector<16x1xf32> to vector<16x16xf32>
    %16 = arith.mulf %7, %15 : vector<16x16xf32>
    %cst_9 = arith.constant dense<0.000000e+00> : vector<16x16xf32>
    %17 = tpu.matmul %16, %16, %cst_9 {dimension_numbers = #tpu.dot_dimension_numbers<[1], [1], [0], [0], [0, 0, 1, 0], [], []>} : vector<16x16xf32>, vector<16x16xf32>, vector<16x16xf32> -> vector<16x16xf32>
    %cst_10 = arith.constant 5.000000e-01 : f32
    %18 = vector.broadcast %cst_10 : f32 to vector<16x16xf32>
    %19 = arith.cmpf ogt, %17, %18 : vector<16x16xf32>
    %cst_11 = arith.constant -9.000000e+15 : f32
    %20 = vector.broadcast %cst_11 : f32 to vector<16x16xf32>
    %21 = arith.select %19, %17, %20 : vector<16x16xi1>, vector<16x16xf32>
    %cst_12 = arith.constant 5.000000e+00 : f32
    %22 = vector.broadcast %cst_12 : f32 to vector<16x16xf32>
    %23 = arith.mulf %21, %22 : vector<16x16xf32>
    %cst_13 = arith.constant dense<0xFF800000> : vector<16xf32>
    %24 = vector.multi_reduction <maximumf>, %23, %cst_13 [1] : vector<16x16xf32> to vector<16xf32>
    %25 = vector.shape_cast %24 : vector<16xf32> to vector<16x1xf32>
    %26 = vector.broadcast %25 : vector<16x1xf32> to vector<16x16xf32>
    %27 = arith.subf %23, %26 : vector<16x16xf32>
    %28 = math.exp %27 : vector<16x16xf32>
    %cst_14 = arith.constant dense<0.000000e+00> : vector<16xf32>
    %29 = vector.multi_reduction <add>, %28, %cst_14 [1] : vector<16x16xf32> to vector<16xf32>
    %30 = vector.shape_cast %29 : vector<16xf32> to vector<16x1xf32>
    %31 = tpu.reciprocal %30 {approx = true} : vector<16x1xf32> -> vector<16x1xf32>
    %32 = vector.broadcast %31 : vector<16x1xf32> to vector<16x16xf32>
    %33 = arith.mulf %28, %32 : vector<16x16xf32>
    %cst_15 = arith.constant dense<0.000000e+00> : vector<16x32xf32>
    %34 = tpu.matmul %33, %8, %cst_15 {dimension_numbers = #tpu.dot_dimension_numbers<[1], [0], [0], [1], [0, 0, 1, 1], [], []>} : vector<16x16xf32>, vector<16x32xf32>, vector<16x32xf32> -> vector<16x32xf32>
    %c1 = arith.constant 1 : index
    %c0_16 = arith.constant 0 : index
    %35 = vector.load %arg5[%c1, %c0_16] : memref<2x48xf32, #tpu.memory_space<vmem>>, vector<1x32xf32>
    %36 = vector.broadcast %35 : vector<1x32xf32> to vector<16x32xf32>
    %37 = arith.addf %34, %36 : vector<16x32xf32>
    %c0_17 = arith.constant 0 : index
    %c0_18 = arith.constant 0 : index
    %38 = vector.load %arg3[%c0_17, %c0_18] : memref<32x32xf32, #tpu.memory_space<vmem>>, vector<32x32xf32>
    %cst_19 = arith.constant dense<0.000000e+00> : vector<8x32xf32>
    %39 = tpu.matmul %0, %38, %cst_19 {dimension_numbers = #tpu.dot_dimension_numbers<[1], [0], [0], [1], [0, 0, 1, 1], [], []>} : vector<8x32xf32>, vector<32x32xf32>, vector<8x32xf32> -> vector<8x32xf32>
    %40 = vector.shape_cast %39 : vector<8x32xf32> to vector<8x1x32xf32>
    %41 = vector.shape_cast %37 : vector<16x32xf32> to vector<1x16x32xf32>
    %42 = vector.broadcast %40 : vector<8x1x32xf32> to vector<8x16x32xf32>
    %43 = vector.broadcast %41 : vector<1x16x32xf32> to vector<8x16x32xf32>
    %44 = arith.addf %42, %43 : vector<8x16x32xf32>
    %cst_20 = arith.constant 0.000000e+00 : f32
    %45 = vector.broadcast %cst_20 : f32 to vector<8x16x32xf32>
    %46 = arith.maximumf %44, %45 : vector<8x16x32xf32>
    %47 = vector.shape_cast %46 : vector<8x16x32xf32> to vector<128x32xf32>
    %c0_21 = arith.constant 0 : index
    %c0_22 = arith.constant 0 : index
    %48 = vector.load %arg4[%c0_21, %c0_22] : memref<32x1xf32, #tpu.memory_space<vmem>>, vector<32x1xf32>
    %cst_23 = arith.constant dense<0.000000e+00> : vector<128x1xf32>
    %49 = tpu.matmul %47, %48, %cst_23 {dimension_numbers = #tpu.dot_dimension_numbers<[1], [0], [0], [1], [0, 0, 1, 1], [], []>} : vector<128x32xf32>, vector<32x1xf32>, vector<128x1xf32> -> vector<128x1xf32>
    %c0_24 = arith.constant 0 : index
    %c0_25 = arith.constant 0 : index
    %50 = memref.load %arg6[%c0_24, %c0_25] : memref<1x1xf32, #tpu.memory_space<smem>>
    %51 = vector.broadcast %50 : f32 to vector<128x1xf32>
    %52 = arith.addf %49, %51 : vector<128x1xf32>
    %c0_26 = arith.constant 0 : index
    %c0_27 = arith.constant 0 : index
    %53 = vector.load %arg7[%c0_26, %c0_27] : memref<128x1xf32, #tpu.memory_space<vmem>>, vector<128x1xf32>
    tpu.vector_store %arg7[%c0_26, %c0_27], %52 {strides = array<i32>} : memref<128x1xf32, #tpu.memory_space<vmem>>, vector<128x1xf32>,
    return
  }
}

</mosaic_0001>

<llo_original>
// kernel: tpu_custom_call.1
$region0: #{tpu_custom_call.1}
  #allocation0 [shape = 'u32[]', space=smem, size = 0x4, offset = 0x4, fixed_abs, tag = 'smem constant byte address 0x4 - core index']
  #allocation1 [shape = 'u32[144,128]{1,0:T(1,128)}', space=vmem, size = 0x12000, scoped, tag = 'internal scratch']
  #allocation2 [shape = 'f32[1,1]{1,0:T(1,128)S(6)}', space=smem, size = 0x200, scoped, tag = 'scoped memory for tpu_custom_call.1']
  %s0 = inlined_call_operand.vmem [shape: f32[8,32], index: 0, kind: input, shape index: {}]
  %s1 = inlined_call_operand.vmem [shape: f32[16,64], index: 1, kind: input, shape index: {}]
  %s2 = inlined_call_operand.vmem [shape: f32[64,48], index: 2, kind: input, shape index: {}]
  %s3 = inlined_call_operand.vmem [shape: f32[32,32], index: 3, kind: input, shape index: {}]
  %s4 = inlined_call_operand.vmem [shape: f32[32,1], index: 4, kind: input, shape index: {}]
  %s5 = inlined_call_operand.vmem [shape: f32[2,48], index: 5, kind: input, shape index: {}]
  %s6 = inlined_call_operand.<no memory space> [shape: f32[1,1], index: 6, kind: input, shape index: {}]
  %s7 = inlined_call_operand.vmem [shape: f32[128,1], index: 7, kind: output, shape index: {}]
  %s8 = sld [smem:[#allocation0]]
  $region38: #{tpu_custom_call.1} parent=0
    _
  %s10 = ssub.s32 1, %s8
  %s11 = scalar_select 0, %s10, %s8
  %12 = sst [smem:[#allocation2]] %s6
  // Predicated region
  $region2: #{tpu_custom_call.1} parent=0 // pred_check
    _
  $region3: #{tpu_custom_call.1} parent=0 // pred_check_branch
    %14 = sbr.rel (0) target = $region5
  $region4: #{tpu_custom_call.1} parent=0 // pred_region
    _
  $region5: #{tpu_custom_call.1} parent=0 // pred_fallthru
    _
  // Predicated region
  $region6: #{tpu_custom_call.1} parent=0 // pred_check
    _
  $region7: #{tpu_custom_call.1} parent=0 // pred_check_branch
    %16 = sbr.rel (0) target = $region9
  $region8: #{tpu_custom_call.1} parent=0 // pred_region
    _
  $region9: #{tpu_custom_call.1} parent=0 // pred_fallthru
    _
  // Predicated region
  $region10: #{tpu_custom_call.1} parent=0 // pred_check
    _
  $region11: #{tpu_custom_call.1} parent=0 // pred_check_branch
    %18 = sbr.rel (0) target = $region13
  $region12: #{tpu_custom_call.1} parent=0 // pred_region
    _
  $region13: #{tpu_custom_call.1} parent=0 // pred_fallthru
    _
  // Predicated region
  $region14: #{tpu_custom_call.1} parent=0 // pred_check
    _
  $region15: #{tpu_custom_call.1} parent=0 // pred_check_branch
    %20 = sbr.rel (0) target = $region17
  $region16: #{tpu_custom_call.1} parent=0 // pred_region
    _
  $region17: #{tpu_custom_call.1} parent=0 // pred_fallthru
    _
  // Predicated region
  $region18: #{tpu_custom_call.1} parent=0 // pred_check
    _
  $region19: #{tpu_custom_call.1} parent=0 // pred_check_branch
    %22 = sbr.rel (0) target = $region21
  $region20: #{tpu_custom_call.1} parent=0 // pred_region
    _
  $region21: #{tpu_custom_call.1} parent=0 // pred_fallthru
    _
  // Predicated region
  $region22: #{tpu_custom_call.1} parent=0 // pred_check
    _
  $region23: #{tpu_custom_call.1} parent=0 // pred_check_branch
    %24 = sbr.rel (0) target = $region25
  $region24: #{tpu_custom_call.1} parent=0 // pred_region
    _
  $region25: #{tpu_custom_call.1} parent=0 // pred_fallthru
    _
  // Predicated region
  $region26: #{tpu_custom_call.1} parent=0 // pred_check
    _
  $region27: #{tpu_custom_call.1} parent=0 // pred_check_branch
    %26 = sbr.rel (0) target = $region29
  $region28: #{tpu_custom_call.1} parent=0 // pred_region
    _
  $region29: #{tpu_custom_call.1} parent=0 // pred_fallthru
    _
  %v27 = vld [vmem:[%s0] sm:$0xff]
  %v28 = vld [vmem:[%s1] sm:$0xff]
  %v29 = vld [vmem:[%s1 + $0x8] sm:$0xff]
  %v30 = vld [vmem:[%s2] sm:$0xff]
  %v31 = vld [vmem:[%s2 + $0x8] sm:$0xff]
  %v32 = vld [vmem:[%s2 + $0x10] sm:$0xff]
  %v33 = vld [vmem:[%s2 + $0x18] sm:$0xff]
  %v34 = vld [vmem:[%s2 + $0x20] sm:$0xff]
  %v35 = vld [vmem:[%s2 + $0x28] sm:$0xff]
  %v36 = vld [vmem:[%s2 + $0x30] sm:$0xff]
  %v37 = vld [vmem:[%s2 + $0x38] sm:$0xff]
  %v38 = vld [vmem:[%s5] sm:$0x1]
  %v39 = vlaneseq
  %v40 = vshrl.u32 %v39, 7
  %v41 = vsub.s32 0, %v40
  %v42 = vrot.slane %v38, %v41
  %vm43 = vcmask 523264
  %v45 = vsel %vm43, %v28, 0
  %v48 = vsel %vm43, %v29, 0
  %50 = vmatprep.subr.mxu0 0.0
  %51 = vmatpush1.msra.mxu0 0.0
  %52 = vmatprep.subr.mxu0 0.0
  %53 = vmatpush1.msra.mxu0 0.0
  %54 = vmatprep.subr.mxu0 0.0
  %55 = vmatpush1.msra.mxu0 0.0
  %56 = vmatprep.subr.mxu0 0.0
  %57 = vmatpush1.msra.mxu0 0.0
  %58 = vmatprep.subr.mxu0 0.0
  %59 = vmatpush1.msra.mxu0 0.0
  %60 = vmatprep.subr.mxu0 0.0
  %61 = vmatpush1.msra.mxu0 0.0
  %62 = vmatprep.subr.mxu0 0.0
  %63 = vmatpush1.msra.mxu0 0.0
  %64 = vmatprep.subr.mxu0 0.0
  %65 = vmatpush1.msra.mxu0 0.0
  %66 = vmatprep.subr.mxu0 0.0
  %67 = vmatpush1.msra.mxu0 %v37
  %68 = vmatprep.subr.mxu0 0.0
  %69 = vmatpush1.msra.mxu0 %v36
  %70 = vmatprep.subr.mxu0 0.0
  %71 = vmatpush1.msra.mxu0 %v35
  %72 = vmatprep.subr.mxu0 0.0
  %73 = vmatpush1.msra.mxu0 %v34
  %74 = vmatprep.subr.mxu0 0.0
  %75 = vmatpush1.msra.mxu0 %v33
  %76 = vmatprep.subr.mxu0 0.0
  %77 = vmatpush1.msra.mxu0 %v32
  %78 = vmatprep.subr.mxu0 0.0
  %79 = vmatpush1.msra.mxu0 %v31
  %80 = vmatprep.subr.mxu0 0.0
  %81 = vmatpush1.msra.mxu0 %v30
  %82 = vmatprep.subr.mxu0 0.0
  %83 = vmatpush2.msra.mxu0 0.0
  %84 = vmatprep.subr.mxu0 0.0
  %85 = vmatpush2.msra.mxu0 0.0
  %86 = vmatprep.subr.mxu0 0.0
  %87 = vmatpush2.msra.mxu0 0.0
  %88 = vmatprep.subr.mxu0 0.0
  %89 = vmatpush2.msra.mxu0 0.0
  %90 = vmatprep.subr.mxu0 0.0
  %91 = vmatpush2.msra.mxu0 0.0
  %92 = vmatprep.subr.mxu0 0.0
  %93 = vmatpush2.msra.mxu0 0.0
  %94 = vmatprep.subr.mxu0 0.0
  %95 = vmatpush2.msra.mxu0 0.0
  %96 = vmatprep.subr.mxu0 0.0
  %97 = vmatpush2.msra.mxu0 0.0
  %98 = vmatprep.subr.mxu0 0.0
  %99 = vmatpush2.msra.mxu0 0.0
  %100 = vmatprep.subr.mxu0 0.0
  %101 = vmatpush2.msra.mxu0 0.0
  %102 = vmatprep.subr.mxu0 0.0
  %103 = vmatpush2.msra.mxu0 0.0
  %104 = vmatprep.subr.mxu0 0.0
  %105 = vmatpush2.msra.mxu0 0.0
  %106 = vmatprep.subr.mxu0 0.0
  %107 = vmatpush2.msra.mxu0 0.0
  %108 = vmatprep.subr.mxu0 0.0
  %109 = vmatpush2.msra.mxu0 0.0
  %110 = vmatprep.subr.mxu0 0.0
  %111 = vmatpush2.msra.mxu0 0.0
  %112 = vmatprep.subr.mxu0 0.0
  %113 = vmatpush2.msra.mxu0 0.0
  %114 = vmatprep.mubr.f32.mxu0 0.0
  %115 = vmatmul.mubr.f32.gmra.mxu0 %v45
  %v116 = vpop.f32.mrf.mxu0
  %v117 = vadd.f32 %v42, %v116
  %v118 = vpop.f32.mrf.mxu0
  %119 = vmatprep.mubr.f32.mxu0 0.0
  %120 = vmatmul.mubr.f32.gmra.mxu0 %v48
  %v121 = vpop.f32.mrf.mxu0
  %v122 = vadd.f32 %v42, %v121
  %v123 = vpop.f32.mrf.mxu0
  %124 = vdwg.mxu0
  %v125 = vmul.f32 %v117, %v117
  %v126 = vmul.f32 %v122, %v122
  %vm127 = vcmask 130048
  %v128 = vsel %vm127, %v125, 0.0
  %129 = vadd.xlane.f32.xlu0 %v128
  %v130 = vpop.xlane.xlu0 %129
  %v131 = vsel %vm127, %v126, 0.0
  %132 = vadd.xlane.f32.xlu0 %v131
  %v133 = vpop.xlane.xlu0 %132
  %v134 = vadd.f32 %v130, 1e-12
  %v135 = vadd.f32 %v133, 1e-12
  %v136 = vrsqrt.pop %v134
  %v137 = vrsqrt.pop %v135
  %v138 = vmul.f32 %v117, %v136
  %v139 = vmul.f32 %v122, %v137
  %v141 = vsel %vm127, %v138, 0
  %v144 = vsel %vm127, %v139, 0
  %146 = vmatprep.subr.mxu0 0.0
  %147 = vmatpush1.xpose.msra.mxu0 0.0
  %148 = vmatprep.subr.mxu0 0.0
  %149 = vmatpush1.xpose.msra.mxu0 0.0
  %150 = vmatprep.subr.mxu0 0.0
  %151 = vmatpush1.xpose.msra.mxu0 0.0
  %152 = vmatprep.subr.mxu0 0.0
  %153 = vmatpush1.xpose.msra.mxu0 0.0
  %154 = vmatprep.subr.mxu0 0.0
  %155 = vmatpush1.xpose.msra.mxu0 0.0
  %156 = vmatprep.subr.mxu0 0.0
  %157 = vmatpush1.xpose.msra.mxu0 0.0
  %158 = vmatprep.subr.mxu0 0.0
  %159 = vmatpush1.xpose.msra.mxu0 0.0
  %160 = vmatprep.subr.mxu0 0.0
  %161 = vmatpush1.xpose.msra.mxu0 0.0
  %162 = vmatprep.subr.mxu0 0.0
  %163 = vmatpush1.xpose.msra.mxu0 0.0
  %164 = vmatprep.subr.mxu0 0.0
  %165 = vmatpush1.xpose.msra.mxu0 0.0
  %166 = vmatprep.subr.mxu0 0.0
  %167 = vmatpush1.xpose.msra.mxu0 0.0
  %168 = vmatprep.subr.mxu0 0.0
  %169 = vmatpush1.xpose.msra.mxu0 0.0
  %170 = vmatprep.subr.mxu0 0.0
  %171 = vmatpush1.xpose.msra.mxu0 0.0
  %172 = vmatprep.subr.mxu0 0.0
  %173 = vmatpush1.xpose.msra.mxu0 0.0
  %174 = vmatprep.subr.mxu0 0.0
  %175 = vmatpush1.xpose.msra.mxu0 %v144
  %176 = vmatprep.subr.mxu0 0.0
  %177 = vmatpush1.xpose.msra.mxu0 %v141
  %178 = vmatprep.subr.mxu0 0.0
  %179 = vmatpush2.xpose.msra.mxu0 0.0
  %180 = vmatprep.subr.mxu0 0.0
  %181 = vmatpush2.xpose.msra.mxu0 0.0
  %182 = vmatprep.subr.mxu0 0.0
  %183 = vmatpush2.xpose.msra.mxu0 0.0
  %184 = vmatprep.subr.mxu0 0.0
  %185 = vmatpush2.xpose.msra.mxu0 0.0
  %186 = vmatprep.subr.mxu0 0.0
  %187 = vmatpush2.xpose.msra.mxu0 0.0
  %188 = vmatprep.subr.mxu0 0.0
  %189 = vmatpush2.xpose.msra.mxu0 0.0
  %190 = vmatprep.subr.mxu0 0.0
  %191 = vmatpush2.xpose.msra.mxu0 0.0
  %192 = vmatprep.subr.mxu0 0.0
  %193 = vmatpush2.xpose.msra.mxu0 0.0
  %194 = vmatprep.subr.mxu0 0.0
  %195 = vmatpush2.xpose.msra.mxu0 0.0
  %196 = vmatprep.subr.mxu0 0.0
  %197 = vmatpush2.xpose.msra.mxu0 0.0
  %198 = vmatprep.subr.mxu0 0.0
  %199 = vmatpush2.xpose.msra.mxu0 0.0
  %200 = vmatprep.subr.mxu0 0.0
  %201 = vmatpush2.xpose.msra.mxu0 0.0
  %202 = vmatprep.subr.mxu0 0.0
  %203 = vmatpush2.xpose.msra.mxu0 0.0
  %204 = vmatprep.subr.mxu0 0.0
  %205 = vmatpush2.xpose.msra.mxu0 0.0
  %206 = vmatprep.subr.mxu0 0.0
  %207 = vmatpush2.xpose.msra.mxu0 0.0
  %208 = vmatprep.subr.mxu0 0.0
  %209 = vmatpush2.xpose.msra.mxu0 0.0
  %210 = vmatprep.mubr.f32.mxu0 0.0
  %211 = vmatmul.mubr.f32.gmra.mxu0 %v141
  %v212 = vpop.f32.mrf.mxu0
  %v213 = vadd.f32 0.0, %v212
  %v214 = vpop.f32.mrf.mxu0
  %215 = vmatprep.mubr.f32.mxu0 0.0
  %216 = vmatmul.mubr.f32.gmra.mxu0 %v144
  %v217 = vpop.f32.mrf.mxu0
  %v218 = vadd.f32 0.0, %v217
  %v219 = vpop.f32.mrf.mxu0
  %220 = vdwg.mxu0
  %vm221 = vcmp.gt.f32.partialorder %v213, 0.5
  %vm222 = vcmp.gt.f32.partialorder %v218, 0.5
  %v223 = vsel %vm221, %v213, -9e+15
  %v224 = vsel %vm222, %v218, -9e+15
  %v225 = vmul.f32 %v223, 5.0
  %v226 = vmul.f32 %v224, 5.0
  %v227 = vsel %vm127, %v225, -inf
  %228 = vmax.xlane.f32.xlu0 %v227
  %v229 = vpop.xlane.xlu0 %228
  %v230 = vsel %vm127, %v226, -inf
  %231 = vmax.xlane.f32.xlu0 %v230
  %v232 = vpop.xlane.xlu0 %231
  %v233 = vsub.f32 %v225, %v229
  %v234 = vsub.f32 %v226, %v232
  %v235 = vmul.f32 %v233, 1.442695
  %v236 = vpow.pop %v235
  %v237 = vmul.f32 %v234, 1.442695
  %v238 = vpow.pop %v237
  %v239 = vsel %vm127, %v236, 0.0
  %240 = vadd.xlane.f32.xlu0 %v239
  %v241 = vpop.xlane.xlu0 %240
  %v242 = vsel %vm127, %v238, 0.0
  %243 = vadd.xlane.f32.xlu0 %v242
  %v244 = vpop.xlane.xlu0 %243
  %v245 = vrcp.pop %v241
  %v246 = vrcp.pop %v244
  %v247 = vmul.f32 %v236, %v245
  %v248 = vmul.f32 %v238, %v246
  %v249 = vld [vmem:[%s5 + $0x1] sm:$0x1]
  %v250 = vlaneseq
  %v251 = vshrl.u32 %v250, 7
  %v252 = vsub.s32 0, %v251
  %v253 = vrot.slane %v249, %v252
  %256 = vrot.lane.b32.xlu0 %v117, 112
  %v257 = vpop.permute.xlu0 %256
  %258 = vrot.lane.b32.xlu0 %v122, 112
  %v259 = vpop.permute.xlu0 %258
  %v263 = vsel %vm127, %v247, 0
  %v266 = vsel %vm127, %v248, 0
  %268 = vmatprep.subr.mxu0 0.0
  %269 = vmatpush1.msra.mxu0 0.0
  %270 = vmatprep.subr.mxu0 0.0
  %271 = vmatpush1.msra.mxu0 0.0
  %272 = vmatprep.subr.mxu0 0.0
  %273 = vmatpush1.msra.mxu0 0.0
  %274 = vmatprep.subr.mxu0 0.0
  %275 = vmatpush1.msra.mxu0 0.0
  %276 = vmatprep.subr.mxu0 0.0
  %277 = vmatpush1.msra.mxu0 0.0
  %278 = vmatprep.subr.mxu0 0.0
  %279 = vmatpush1.msra.mxu0 0.0
  %280 = vmatprep.subr.mxu0 0.0
  %281 = vmatpush1.msra.mxu0 0.0
  %282 = vmatprep.subr.mxu0 0.0
  %283 = vmatpush1.msra.mxu0 0.0
  %284 = vmatprep.subr.mxu0 0.0
  %285 = vmatpush1.msra.mxu0 0.0
  %286 = vmatprep.subr.mxu0 0.0
  %287 = vmatpush1.msra.mxu0 0.0
  %288 = vmatprep.subr.mxu0 0.0
  %289 = vmatpush1.msra.mxu0 0.0
  %290 = vmatprep.subr.mxu0 0.0
  %291 = vmatpush1.msra.mxu0 0.0
  %292 = vmatprep.subr.mxu0 0.0
  %293 = vmatpush1.msra.mxu0 0.0
  %294 = vmatprep.subr.mxu0 0.0
  %295 = vmatpush1.msra.mxu0 0.0
  %296 = vmatprep.subr.mxu0 0.0
  %297 = vmatpush1.msra.mxu0 %v259
  %298 = vmatprep.subr.mxu0 0.0
  %299 = vmatpush1.msra.mxu0 %v257
  %300 = vmatprep.subr.mxu0 0.0
  %301 = vmatpush2.msra.mxu0 0.0
  %302 = vmatprep.subr.mxu0 0.0
  %303 = vmatpush2.msra.mxu0 0.0
  %304 = vmatprep.subr.mxu0 0.0
  %305 = vmatpush2.msra.mxu0 0.0
  %306 = vmatprep.subr.mxu0 0.0
  %307 = vmatpush2.msra.mxu0 0.0
  %308 = vmatprep.subr.mxu0 0.0
  %309 = vmatpush2.msra.mxu0 0.0
  %310 = vmatprep.subr.mxu0 0.0
  %311 = vmatpush2.msra.mxu0 0.0
  %312 = vmatprep.subr.mxu0 0.0
  %313 = vmatpush2.msra.mxu0 0.0
  %314 = vmatprep.subr.mxu0 0.0
  %315 = vmatpush2.msra.mxu0 0.0
  %316 = vmatprep.subr.mxu0 0.0
  %317 = vmatpush2.msra.mxu0 0.0
  %318 = vmatprep.subr.mxu0 0.0
  %319 = vmatpush2.msra.mxu0 0.0
  %320 = vmatprep.subr.mxu0 0.0
  %321 = vmatpush2.msra.mxu0 0.0
  %322 = vmatprep.subr.mxu0 0.0
  %323 = vmatpush2.msra.mxu0 0.0
  %324 = vmatprep.subr.mxu0 0.0
  %325 = vmatpush2.msra.mxu0 0.0
  %326 = vmatprep.subr.mxu0 0.0
  %327 = vmatpush2.msra.mxu0 0.0
  %328 = vmatprep.subr.mxu0 0.0
  %329 = vmatpush2.msra.mxu0 0.0
  %330 = vmatprep.subr.mxu0 0.0
  %331 = vmatpush2.msra.mxu0 0.0
  %332 = vmatprep.mubr.f32.mxu0 0.0
  %333 = vmatmul.mubr.f32.gmra.mxu0 %v263
  %v334 = vpop.f32.mrf.mxu0
  %v335 = vadd.f32 %v253, %v334
  %v336 = vpop.f32.mrf.mxu0
  %337 = vmatprep.mubr.f32.mxu0 0.0
  %338 = vmatmul.mubr.f32.gmra.mxu0 %v266
  %v339 = vpop.f32.mrf.mxu0
  %v340 = vadd.f32 %v253, %v339
  %v341 = vpop.f32.mrf.mxu0
  %342 = vdwg.mxu0
  %v343 = vld [vmem:[%s3] sm:$0xff]
  %v344 = vld [vmem:[%s3 + $0x8] sm:$0xff]
  %v345 = vld [vmem:[%s3 + $0x10] sm:$0xff]
  %v346 = vld [vmem:[%s3 + $0x18] sm:$0xff]
  %vm347 = vcmask 261120
  %v349 = vsel %vm347, %v27, 0
  %351 = vmatprep.subr.mxu0 0.0
  %352 = vmatpush1.msra.mxu0 0.0
  %353 = vmatprep.subr.mxu0 0.0
  %354 = vmatpush1.msra.mxu0 0.0
  %355 = vmatprep.subr.mxu0 0.0
  %356 = vmatpush1.msra.mxu0 0.0
  %357 = vmatprep.subr.mxu0 0.0
  %358 = vmatpush1.msra.mxu0 0.0
  %359 = vmatprep.subr.mxu0 0.0
  %360 = vmatpush1.msra.mxu0 0.0
  %361 = vmatprep.subr.mxu0 0.0
  %362 = vmatpush1.msra.mxu0 0.0
  %363 = vmatprep.subr.mxu0 0.0
  %364 = vmatpush1.msra.mxu0 0.0
  %365 = vmatprep.subr.mxu0 0.0
  %366 = vmatpush1.msra.mxu0 0.0
  %367 = vmatprep.subr.mxu0 0.0
  %368 = vmatpush1.msra.mxu0 0.0
  %369 = vmatprep.subr.mxu0 0.0
  %370 = vmatpush1.msra.mxu0 0.0
  %371 = vmatprep.subr.mxu0 0.0
  %372 = vmatpush1.msra.mxu0 0.0
  %373 = vmatprep.subr.mxu0 0.0
  %374 = vmatpush1.msra.mxu0 0.0
  %375 = vmatprep.subr.mxu0 0.0
  %376 = vmatpush1.msra.mxu0 %v346
  %377 = vmatprep.subr.mxu0 0.0
  %378 = vmatpush1.msra.mxu0 %v345
  %379 = vmatprep.subr.mxu0 0.0
  %380 = vmatpush1.msra.mxu0 %v344
  %381 = vmatprep.subr.mxu0 0.0
  %382 = vmatpush1.msra.mxu0 %v343
  %383 = vmatprep.subr.mxu0 0.0
  %384 = vmatpush2.msra.mxu0 0.0
  %385 = vmatprep.subr.mxu0 0.0
  %386 = vmatpush2.msra.mxu0 0.0
  %387 = vmatprep.subr.mxu0 0.0
  %388 = vmatpush2.msra.mxu0 0.0
  %389 = vmatprep.subr.mxu0 0.0
  %390 = vmatpush2.msra.mxu0 0.0
  %391 = vmatprep.subr.mxu0 0.0
  %392 = vmatpush2.msra.mxu0 0.0
  %393 = vmatprep.subr.mxu0 0.0
  %394 = vmatpush2.msra.mxu0 0.0
  %395 = vmatprep.subr.mxu0 0.0
  %396 = vmatpush2.msra.mxu0 0.0
  %397 = vmatprep.subr.mxu0 0.0
  %398 = vmatpush2.msra.mxu0 0.0
  %399 = vmatprep.subr.mxu0 0.0
  %400 = vmatpush2.msra.mxu0 0.0
  %401 = vmatprep.subr.mxu0 0.0
  %402 = vmatpush2.msra.mxu0 0.0
  %403 = vmatprep.subr.mxu0 0.0
  %404 = vmatpush2.msra.mxu0 0.0
  %405 = vmatprep.subr.mxu0 0.0
  %406 = vmatpush2.msra.mxu0 0.0
  %407 = vmatprep.subr.mxu0 0.0
  %408 = vmatpush2.msra.mxu0 0.0
  %409 = vmatprep.subr.mxu0 0.0
  %410 = vmatpush2.msra.mxu0 0.0
  %411 = vmatprep.subr.mxu0 0.0
  %412 = vmatpush2.msra.mxu0 0.0
  %413 = vmatprep.subr.mxu0 0.0
  %414 = vmatpush2.msra.mxu0 0.0
  %415 = vmatprep.mubr.f32.mxu0 0.0
  %416 = vmatmul.mubr.f32.gmra.mxu0 %v349
  %v417 = vpop.f32.mrf.mxu0
  %v418 = vadd.f32 0.0, %v417
  %v419 = vpop.f32.mrf.mxu0
  %420 = vdwg.mxu0
  %v422 = vcombine.high %v418, %v418
  %v424 = vunpack.c.l.s4 1966171168
  %v425 = vunpack.c.0.s8 %v424
  %v426 = vlaneseq
  %v427 = vshrl.u32 %v426, 7
  %v428 = vsub.s32 %v425, %v427
  %v429 = vrot.slane %v418, %v428
  %v431 = vunpack.c.l.s4 1966171168
  %v432 = vunpack.c.0.s8 %v431
  %v433 = vlaneseq
  %v434 = vshrl.u32 %v433, 7
  %v435 = vsub.s32 %v432, %v434
  %v436 = vrot.slane %v422, %v435
  %v437 = vcombine.high %v429, %v429
  %v438 = vcombine.high %v436, %v436
  %v440 = vunpack.c.l.s4 1966171168
  %v441 = vunpack.c.0.s8 %v440
  %v442 = vlaneseq
  %v443 = vshrl.u32 %v442, 7
  %v444 = vsub.s32 %v441, %v443
  %v445 = vrot.slane %v429, %v444
  %v447 = vunpack.c.l.s4 1966171168
  %v448 = vunpack.c.0.s8 %v447
  %v449 = vlaneseq
  %v450 = vshrl.u32 %v449, 7
  %v451 = vsub.s32 %v448, %v450
  %v452 = vrot.slane %v436, %v451
  %v454 = vunpack.c.l.s4 1966171168
  %v455 = vunpack.c.0.s8 %v454
  %v456 = vlaneseq
  %v457 = vshrl.u32 %v456, 7
  %v458 = vsub.s32 %v455, %v457
  %v459 = vrot.slane %v437, %v458
  %v461 = vunpack.c.l.s4 1966171168
  %v462 = vunpack.c.0.s8 %v461
  %v463 = vlaneseq
  %v464 = vshrl.u32 %v463, 7
  %v465 = vsub.s32 %v462, %v464
  %v466 = vrot.slane %v438, %v465
  %v467 = vcombine.high %v445, %v445
  %v468 = vcombine.high %v452, %v452
  %v469 = vcombine.high %v459, %v459
  %v470 = vcombine.high %v466, %v466
  %v471 = vlaneseq
  %v472 = vshrl.u32 %v471, 7
  %v473 = vsub.s32 0, %v472
  %v474 = vrot.slane %v445, %v473
  %v475 = vlaneseq
  %v476 = vshrl.u32 %v475, 7
  %v477 = vsub.s32 0, %v476
  %v478 = vrot.slane %v459, %v477
  %v479 = vlaneseq
  %v480 = vshrl.u32 %v479, 7
  %v481 = vsub.s32 0, %v480
  %v482 = vrot.slane %v467, %v481
  %v483 = vlaneseq
  %v484 = vshrl.u32 %v483, 7
  %v485 = vsub.s32 0, %v484
  %v486 = vrot.slane %v469, %v485
  %v487 = vlaneseq
  %v488 = vshrl.u32 %v487, 7
  %v489 = vsub.s32 0, %v488
  %v490 = vrot.slane %v452, %v489
  %v491 = vlaneseq
  %v492 = vshrl.u32 %v491, 7
  %v493 = vsub.s32 0, %v492
  %v494 = vrot.slane %v466, %v493
  %v495 = vlaneseq
  %v496 = vshrl.u32 %v495, 7
  %v497 = vsub.s32 0, %v496
  %v498 = vrot.slane %v468, %v497
  %v499 = vlaneseq
  %v500 = vshrl.u32 %v499, 7
  %v501 = vsub.s32 0, %v500
  %v502 = vrot.slane %v470, %v501
  %v511 = vadd.f32 %v474, %v335
  %v512 = vadd.f32 %v474, %v340
  %v513 = vadd.f32 %v478, %v335
  %v514 = vadd.f32 %v478, %v340
  %v515 = vadd.f32 %v482, %v335
  %v516 = vadd.f32 %v482, %v340
  %v517 = vadd.f32 %v486, %v335
  %v518 = vadd.f32 %v486, %v340
  %v519 = vadd.f32 %v490, %v335
  %v520 = vadd.f32 %v490, %v340
  %v521 = vadd.f32 %v494, %v335
  %v522 = vadd.f32 %v494, %v340
  %v523 = vadd.f32 %v498, %v335
  %v524 = vadd.f32 %v498, %v340
  %v525 = vadd.f32 %v502, %v335
  %v526 = vadd.f32 %v502, %v340
  %v527 = vmax.f32 %v511, 0.0
  %v528 = vmax.f32 %v512, 0.0
  %v529 = vmax.f32 %v513, 0.0
  %v530 = vmax.f32 %v514, 0.0
  %v531 = vmax.f32 %v515, 0.0
  %v532 = vmax.f32 %v516, 0.0
  %v533 = vmax.f32 %v517, 0.0
  %v534 = vmax.f32 %v518, 0.0
  %v535 = vmax.f32 %v519, 0.0
  %v536 = vmax.f32 %v520, 0.0
  %v537 = vmax.f32 %v521, 0.0
  %v538 = vmax.f32 %v522, 0.0
  %v539 = vmax.f32 %v523, 0.0
  %v540 = vmax.f32 %v524, 0.0
  %v541 = vmax.f32 %v525, 0.0
  %v542 = vmax.f32 %v526, 0.0
  %v543 = vld [vmem:[%s4] sm:$0xff]
  %v544 = vld [vmem:[%s4 + $0x8] sm:$0xff]
  %v545 = vld [vmem:[%s4 + $0x10] sm:$0xff]
  %v546 = vld [vmem:[%s4 + $0x18] sm:$0xff]
  %s547 = sld [smem:[#allocation2]]
  %v548 = vstv %s547
  %v550 = vsel %vm347, %v527, 0
  %v553 = vsel %vm347, %v528, 0
  %v556 = vsel %vm347, %v529, 0
  %v559 = vsel %vm347, %v530, 0
  %v562 = vsel %vm347, %v531, 0
  %v565 = vsel %vm347, %v532, 0
  %v568 = vsel %vm347, %v533, 0
  %v571 = vsel %vm347, %v534, 0
  %v574 = vsel %vm347, %v535, 0
  %v577 = vsel %vm347, %v536, 0
  %v580 = vsel %vm347, %v537, 0
  %v583 = vsel %vm347, %v538, 0
  %v586 = vsel %vm347, %v539, 0
  %v589 = vsel %vm347, %v540, 0
  %v592 = vsel %vm347, %v541, 0
  %v595 = vsel %vm347, %v542, 0
  %597 = vmatprep.subr.mxu0 0.0
  %598 = vmatpush1.msra.mxu0 0.0
  %599 = vmatprep.subr.mxu0 0.0
  %600 = vmatpush1.msra.mxu0 0.0
  %601 = vmatprep.subr.mxu0 0.0
  %602 = vmatpush1.msra.mxu0 0.0
  %603 = vmatprep.subr.mxu0 0.0
  %604 = vmatpush1.msra.mxu0 0.0
  %605 = vmatprep.subr.mxu0 0.0
  %606 = vmatpush1.msra.mxu0 0.0
  %607 = vmatprep.subr.mxu0 0.0
  %608 = vmatpush1.msra.mxu0 0.0
  %609 = vmatprep.subr.mxu0 0.0
  %610 = vmatpush1.msra.mxu0 0.0
  %611 = vmatprep.subr.mxu0 0.0
  %612 = vmatpush1.msra.mxu0 0.0
  %613 = vmatprep.subr.mxu0 0.0
  %614 = vmatpush1.msra.mxu0 0.0
  %615 = vmatprep.subr.mxu0 0.0
  %616 = vmatpush1.msra.mxu0 0.0
  %617 = vmatprep.subr.mxu0 0.0
  %618 = vmatpush1.msra.mxu0 0.0
  %619 = vmatprep.subr.mxu0 0.0
  %620 = vmatpush1.msra.mxu0 0.0
  %621 = vmatprep.subr.mxu0 0.0
  %622 = vmatpush1.msra.mxu0 %v546
  %623 = vmatprep.subr.mxu0 0.0
  %624 = vmatpush1.msra.mxu0 %v545
  %625 = vmatprep.subr.mxu0 0.0
  %626 = vmatpush1.msra.mxu0 %v544
  %627 = vmatprep.subr.mxu0 0.0
  %628 = vmatpush1.msra.mxu0 %v543
  %629 = vmatprep.subr.mxu0 0.0
  %630 = vmatpush2.msra.mxu0 0.0
  %631 = vmatprep.subr.mxu0 0.0
  %632 = vmatpush2.msra.mxu0 0.0
  %633 = vmatprep.subr.mxu0 0.0
  %634 = vmatpush2.msra.mxu0 0.0
  %635 = vmatprep.subr.mxu0 0.0
  %636 = vmatpush2.msra.mxu0 0.0
  %637 = vmatprep.subr.mxu0 0.0
  %638 = vmatpush2.msra.mxu0 0.0
  %639 = vmatprep.subr.mxu0 0.0
  %640 = vmatpush2.msra.mxu0 0.0
  %641 = vmatprep.subr.mxu0 0.0
  %642 = vmatpush2.msra.mxu0 0.0
  %643 = vmatprep.subr.mxu0 0.0
  %644 = vmatpush2.msra.mxu0 0.0
  %645 = vmatprep.subr.mxu0 0.0
  %646 = vmatpush2.msra.mxu0 0.0
  %647 = vmatprep.subr.mxu0 0.0
  %648 = vmatpush2.msra.mxu0 0.0
  %649 = vmatprep.subr.mxu0 0.0
  %650 = vmatpush2.msra.mxu0 0.0
  %651 = vmatprep.subr.mxu0 0.0
  %652 = vmatpush2.msra.mxu0 0.0
  %653 = vmatprep.subr.mxu0 0.0
  %654 = vmatpush2.msra.mxu0 0.0
  %655 = vmatprep.subr.mxu0 0.0
  %656 = vmatpush2.msra.mxu0 0.0
  %657 = vmatprep.subr.mxu0 0.0
  %658 = vmatpush2.msra.mxu0 0.0
  %659 = vmatprep.subr.mxu0 0.0
  %660 = vmatpush2.msra.mxu0 0.0
  %661 = vmatprep.mubr.f32.mxu0 0.0
  %662 = vmatmul.mubr.f32.gmra.mxu0 %v550
  %v663 = vpop.f32.mrf.mxu0
  %v664 = vadd.f32 %v548, %v663
  %v665 = vpop.f32.mrf.mxu0
  %666 = vmatprep.mubr.f32.mxu0 0.0
  %667 = vmatmul.mubr.f32.gmra.mxu0 %v553
  %v668 = vpop.f32.mrf.mxu0
  %v669 = vadd.f32 %v548, %v668
  %v670 = vpop.f32.mrf.mxu0
  %671 = vmatprep.mubr.f32.mxu0 0.0
  %672 = vmatmul.mubr.f32.gmra.mxu0 %v556
  %v673 = vpop.f32.mrf.mxu0
  %v674 = vadd.f32 %v548, %v673
  %v675 = vpop.f32.mrf.mxu0
  %676 = vmatprep.mubr.f32.mxu0 0.0
  %677 = vmatmul.mubr.f32.gmra.mxu0 %v559
  %v678 = vpop.f32.mrf.mxu0
  %v679 = vadd.f32 %v548, %v678
  %v680 = vpop.f32.mrf.mxu0
  %681 = vmatprep.mubr.f32.mxu0 0.0
  %682 = vmatmul.mubr.f32.gmra.mxu0 %v562
  %v683 = vpop.f32.mrf.mxu0
  %v684 = vadd.f32 %v548, %v683
  %v685 = vpop.f32.mrf.mxu0
  %686 = vmatprep.mubr.f32.mxu0 0.0
  %687 = vmatmul.mubr.f32.gmra.mxu0 %v565
  %v688 = vpop.f32.mrf.mxu0
  %v689 = vadd.f32 %v548, %v688
  %v690 = vpop.f32.mrf.mxu0
  %691 = vmatprep.mubr.f32.mxu0 0.0
  %692 = vmatmul.mubr.f32.gmra.mxu0 %v568
  %v693 = vpop.f32.mrf.mxu0
  %v694 = vadd.f32 %v548, %v693
  %v695 = vpop.f32.mrf.mxu0
  %696 = vmatprep.mubr.f32.mxu0 0.0
  %697 = vmatmul.mubr.f32.gmra.mxu0 %v571
  %v698 = vpop.f32.mrf.mxu0
  %v699 = vadd.f32 %v548, %v698
  %v700 = vpop.f32.mrf.mxu0
  %701 = vmatprep.mubr.f32.mxu0 0.0
  %702 = vmatmul.mubr.f32.gmra.mxu0 %v574
  %v703 = vpop.f32.mrf.mxu0
  %v704 = vadd.f32 %v548, %v703
  %v705 = vpop.f32.mrf.mxu0
  %706 = vmatprep.mubr.f32.mxu0 0.0
  %707 = vmatmul.mubr.f32.gmra.mxu0 %v577
  %v708 = vpop.f32.mrf.mxu0
  %v709 = vadd.f32 %v548, %v708
  %v710 = vpop.f32.mrf.mxu0
  %711 = vmatprep.mubr.f32.mxu0 0.0
  %712 = vmatmul.mubr.f32.gmra.mxu0 %v580
  %v713 = vpop.f32.mrf.mxu0
  %v714 = vadd.f32 %v548, %v713
  %v715 = vpop.f32.mrf.mxu0
  %716 = vmatprep.mubr.f32.mxu0 0.0
  %717 = vmatmul.mubr.f32.gmra.mxu0 %v583
  %v718 = vpop.f32.mrf.mxu0
  %v719 = vadd.f32 %v548, %v718
  %v720 = vpop.f32.mrf.mxu0
  %721 = vmatprep.mubr.f32.mxu0 0.0
  %722 = vmatmul.mubr.f32.gmra.mxu0 %v586
  %v723 = vpop.f32.mrf.mxu0
  %v724 = vadd.f32 %v548, %v723
  %v725 = vpop.f32.mrf.mxu0
  %726 = vmatprep.mubr.f32.mxu0 0.0
  %727 = vmatmul.mubr.f32.gmra.mxu0 %v589
  %v728 = vpop.f32.mrf.mxu0
  %v729 = vadd.f32 %v548, %v728
  %v730 = vpop.f32.mrf.mxu0
  %731 = vmatprep.mubr.f32.mxu0 0.0
  %732 = vmatmul.mubr.f32.gmra.mxu0 %v592
  %v733 = vpop.f32.mrf.mxu0
  %v734 = vadd.f32 %v548, %v733
  %v735 = vpop.f32.mrf.mxu0
  %736 = vmatprep.mubr.f32.mxu0 0.0
  %737 = vmatmul.mubr.f32.gmra.mxu0 %v595
  %v738 = vpop.f32.mrf.mxu0
  %v739 = vadd.f32 %v548, %v738
  %v740 = vpop.f32.mrf.mxu0
  %741 = vdwg.mxu0
  %vm742 = vcmask 7168
  %743 = vst.msk [vmem:[%s7] sm:$0xff] %vm742, %v664
  %744 = vst.msk [vmem:[%s7 + $0x8] sm:$0xff] %vm742, %v669
  %745 = vst.msk [vmem:[%s7 + $0x10] sm:$0xff] %vm742, %v674
  %746 = vst.msk [vmem:[%s7 + $0x18] sm:$0xff] %vm742, %v679
  %747 = vst.msk [vmem:[%s7 + $0x20] sm:$0xff] %vm742, %v684
  %748 = vst.msk [vmem:[%s7 + $0x28] sm:$0xff] %vm742, %v689
  %749 = vst.msk [vmem:[%s7 + $0x30] sm:$0xff] %vm742, %v694
  %750 = vst.msk [vmem:[%s7 + $0x38] sm:$0xff] %vm742, %v699
  %751 = vst.msk [vmem:[%s7 + $0x40] sm:$0xff] %vm742, %v704
  %752 = vst.msk [vmem:[%s7 + $0x48] sm:$0xff] %vm742, %v709
  %753 = vst.msk [vmem:[%s7 + $0x50] sm:$0xff] %vm742, %v714
  %754 = vst.msk [vmem:[%s7 + $0x58] sm:$0xff] %vm742, %v719
  %755 = vst.msk [vmem:[%s7 + $0x60] sm:$0xff] %vm742, %v724
  %756 = vst.msk [vmem:[%s7 + $0x68] sm:$0xff] %vm742, %v729
  %757 = vst.msk [vmem:[%s7 + $0x70] sm:$0xff] %vm742, %v734
  %758 = vst.msk [vmem:[%s7 + $0x78] sm:$0xff] %vm742, %v739
  // Predicated region
  $region30: #{tpu_custom_call.1} parent=0 // pred_check
    _
  $region31: #{tpu_custom_call.1} parent=0 // pred_check_branch
    %760 = sbr.rel (0) target = $region33
  $region32: #{tpu_custom_call.1} parent=0 // pred_region
    _
  $region33: #{tpu_custom_call.1} parent=0 // pred_fallthru
    _
  // Predicated region
  $region34: #{tpu_custom_call.1} parent=0 // pred_check
    _
  $region35: #{tpu_custom_call.1} parent=0 // pred_check_branch
    %762 = sbr.rel (0) target = $region37
  $region36: #{tpu_custom_call.1} parent=0 // pred_region
    _
  $region37: #{tpu_custom_call.1} parent=0 // pred_fallthru
    _

</llo_original>
